<compile_context>
chip_gen: v6e
topology: v6e:2x2x1
jax: 0.10.0
libtpu: 0.0.40
codegen_flags: <defaults>
</compile_context>

<pallas_src>
import jax
import jax.numpy as jnp
from jax.experimental import pallas as pl
from jax.experimental.pallas import tpu as pltpu

B, N, F_IN, HID = 2, 16, 121, 64
F_PAD = 128               # lane-dense feature/hidden width
BN = B * N                # stacked node rows for the whole batch
WBLK = 2 * F_PAD          # rows per merged layer-weight block ([self; neigh])
P_ROWS = 3 * WBLK + 8     # 776 rows: 3 weight blocks + bias/head tail


def graphsage_kernel(A_ref, x_ref, m_ref, p_ref, out_ref):
    m = m_ref[...]                                  # (BN, F_PAD) padded masks

    # Static, aligned views into the single packed parameter buffer.
    W1 = p_ref[0 * WBLK:1 * WBLK, :]                # (256, 128)
    W2 = p_ref[1 * WBLK:2 * WBLK, :]                # (256, 128)
    W3 = p_ref[2 * WBLK:3 * WBLK, :]                # (256, 128)
    tail = p_ref[3 * WBLK:3 * WBLK + 8, :]          # (8, 128) biases + head
    b1 = tail[0:1, :]
    b2 = tail[1:2, :]
    b3 = tail[2:3, :]
    wl = tail[3:4, :]                               # (1, 128) head weights (cols 64: are 0)
    bl = tail[4:5, 0:1]                             # (1, 1)   head bias

    def layer(h, W, b):
        # Per-graph neighbour aggregation: two (16,16)@(16,128) MXU pushes.
        agg = jnp.concatenate(
            [jnp.dot(A_ref[g], h[g * N:(g + 1) * N, :],
                     preferred_element_type=jnp.float32)
             for g in range(B)],
            axis=0)                                 # (BN, F_PAD)
        # concat([h, agg]) @ [[W_self],[W_neigh]] == h @ Ws + agg @ Wn
        # -> one full-tile (32,256)@(256,128) matmul per layer.
        cat = jnp.concatenate([h, agg], axis=-1)    # (BN, 2*F_PAD), tile-aligned
        z = jnp.dot(cat, W, preferred_element_type=jnp.float32) + b
        # ReLU then mask; pad columns (>=64) stay exactly zero.
        return jnp.maximum(z, 0.0) * m

    h = layer(x_ref[...], W1, b1)                   # (BN, F_PAD)
    h = layer(h, W2, b2)
    h = layer(h, W3, b3)

    # Per-graph global max pool (sublane reduce) + fused 64->1 head.
    pooled = jnp.concatenate(
        [jnp.max(h[g * N:(g + 1) * N, :], axis=0, keepdims=True) for g in range(B)],
        axis=0)                                     # (B, F_PAD)
    out_ref[...] = jnp.sum(pooled * wl, axis=-1, keepdims=True) + bl   # (B, 1)


@jax.jit
def toy_graphsage_forward(A, x, masks, packed):
    # Only per-call prep: one fused zero-pad(+reshape) per runtime input so every
    # kernel operand is (8,128)-lane aligned.  Mask columns >= 64 multiply zero
    # activation columns, so padding the mask with the raw extra columns/zeros
    # is exact.  All parameter packing happened once at init.
    pad = ((0, 0), (0, 0), (0, F_PAD - F_IN))
    x_st = jnp.pad(x, pad).reshape(BN, F_PAD)
    m_st = jnp.pad(masks, pad).reshape(BN, F_PAD)

    return pl.pallas_call(
        graphsage_kernel,
        out_shape=jax.ShapeDtypeStruct((B, 1), jnp.float32),
        grid_spec=pltpu.PrefetchScalarGridSpec(
            num_scalar_prefetch=0,
            grid=(1,),                              # whole batch in one step (~430 KB total)
            in_specs=[
                pl.BlockSpec((B, N, N), lambda i: (0, 0, 0)),      # A, raw
                pl.BlockSpec((BN, F_PAD), lambda i: (0, 0)),       # x, padded+stacked
                pl.BlockSpec((BN, F_PAD), lambda i: (0, 0)),       # masks
                pl.BlockSpec((P_ROWS, F_PAD), lambda i: (0, 0)),   # packed params
            ],
            out_specs=pl.BlockSpec((B, 1), lambda i: (0, 0)),
        ),
        compiler_params=pltpu.CompilerParams(
            dimension_semantics=("arbitrary",)),
    )(A, x_st, m_st, packed)


def pack_params(w1, b1, w2, b2, w3, b3, wl, bl):
    """One-time packing of all parameters into a single (776, 128) f32 buffer.

    Layout (rows):
      [0,   256)  layer-1 merged weight: rows 0:121 = W1_self, 128:249 = W1_neigh
      [256, 512)  layer-2 merged weight: rows 0:64  = W2_self, 128:192 = W2_neigh
      [512, 768)  layer-3 merged weight (same structure as layer 2)
      [768, 776)  tail: row0 b1, row1 b2, row2 b3, row3 head weight, row4[0] head bias
    All output dims zero-padded 64 -> 128 (exact: pad activation columns stay 0).
    """
    def pad_cols(w):                                # (k, HID) -> (k, F_PAD)
        return jnp.pad(w.astype(jnp.float32), ((0, 0), (0, F_PAD - HID)))

    def weight_block(w):                            # w: (2*k, HID) -> (256, 128)
        k = w.shape[0] // 2
        blk = jnp.zeros((WBLK, F_PAD), jnp.float32)
        blk = blk.at[0:k, :].set(pad_cols(w[:k]))                   # self half
        blk = blk.at[F_PAD:F_PAD + k, :].set(pad_cols(w[k:]))       # neighbour half
        return blk

    tail = jnp.zeros((8, F_PAD), jnp.float32)
    tail = tail.at[0, :HID].set(b1.reshape(-1))
    tail = tail.at[1, :HID].set(b2.reshape(-1))
    tail = tail.at[2, :HID].set(b3.reshape(-1))
    tail = tail.at[3, :HID].set(wl.reshape(-1))
    tail = tail.at[4, 0].set(bl.reshape(-1)[0])
    return jnp.concatenate(
        [weight_block(w1), weight_block(w2), weight_block(w3), tail], axis=0)


def init_linear(key, fan_in, fan_out):
    """PyTorch-style nn.Linear init (uniform +-1/sqrt(fan_in)), math layout (in,out)."""
    kw, kb = jax.random.split(key)
    bound = 1.0 / float(fan_in) ** 0.5
    w = jax.random.uniform(kw, (fan_in, fan_out), jnp.float32, -bound, bound)
    b = jax.random.uniform(kb, (1, fan_out), jnp.float32, -bound, bound)
    return w, b


def reference_forward(A, x, masks, raw_params):
    (w1, b1, w2, b2, w3, b3, wl, bl) = raw_params

    def sage(A, h, w, b):
        k = w.shape[0] // 2
        agg = jnp.einsum("bij,bjf->bif", A, h)
        return jnp.maximum(h @ w[:k] + agg @ w[k:] + b, 0.0)

    m = masks[:, :, :HID]
    h = sage(A, x, w1, b1) * m
    h = sage(A, h, w2, b2) * m
    h = sage(A, h, w3, b3) * m
    pooled = jnp.max(h, axis=1)                     # (B, HID)
    return pooled @ wl + bl                         # (B, 1)


if __name__ == "__main__":
    key = jax.random.PRNGKey(0)
    k_a, k_x, k_m, k1, k2, k3, k4 = jax.random.split(key, 7)

    # Inputs: adjacency (row-normalized), node features, node/feature masks.
    A_raw = (jax.random.uniform(k_a, (B, N, N)) > 0.5).astype(jnp.float32)
    A = A_raw / jnp.maximum(A_raw.sum(-1, keepdims=True), 1.0)
    x = jax.random.normal(k_x, (B, N, F_IN), dtype=jnp.float32)
    masks = (jax.random.uniform(k_m, (B, N, F_IN)) > 0.2).astype(jnp.float32)

    # Parameters (GraphSAGE weight of shape (2*in, out); linear head 64->1).
    w1, b1 = init_linear(k1, 2 * F_IN, HID)
    w2, b2 = init_linear(k2, 2 * HID, HID)
    w3, b3 = init_linear(k3, 2 * HID, HID)
    wl, bl = init_linear(k4, HID, 1)
    raw_params = (w1, b1, w2, b2, w3, b3, wl, bl)

    # One-time parameter packing (outside the per-call path).
    packed = jax.block_until_ready(pack_params(*raw_params))

    out = toy_graphsage_forward(A, x, masks, packed)
    out = jax.block_until_ready(out)

    ref = reference_forward(A, x, masks, raw_params)
    assert out.shape == (B, 1)
    assert jnp.allclose(out, ref, atol=1e-4, rtol=1e-4), (out, ref)

    print("KERNEL_OK")
</pallas_src>

<mosaic_0001>
module attributes {stable_mosaic.version = 11 : i64} {
  func.func @graphsage_kernel(%arg0: i32, %arg1: memref<2x16x16xf32, #tpu.memory_space<vmem>>, %arg2: memref<32x128xf32, #tpu.memory_space<vmem>>, %arg3: memref<32x128xf32, #tpu.memory_space<vmem>>, %arg4: memref<776x128xf32, #tpu.memory_space<vmem>>, %arg5: memref<2x1xf32, #tpu.memory_space<vmem>>) attributes {dimension_semantics = [#tpu.dimension_semantics<arbitrary>], iteration_bounds = array<i64: 1>, scalar_prefetch = 0 : i64, scratch_operands = 0 : i64, tpu.core_type = #tpu.core_type<tc>, window_params = [{pipeline_mode = #tpu.pipeline_mode<synchronous>, transform_indices = @transform_0, window_bounds = array<i64: 2, 16, 16>}, {pipeline_mode = #tpu.pipeline_mode<synchronous>, transform_indices = @transform_1, window_bounds = array<i64: 32, 128>}, {pipeline_mode = #tpu.pipeline_mode<synchronous>, transform_indices = @transform_2, window_bounds = array<i64: 32, 128>}, {pipeline_mode = #tpu.pipeline_mode<synchronous>, transform_indices = @transform_3, window_bounds = array<i64: 776, 128>}, {pipeline_mode = #tpu.pipeline_mode<synchronous>, transform_indices = @transform_4, window_bounds = array<i64: 2, 1>}]} {
    %c0 = arith.constant 0 : index
    %c0_0 = arith.constant 0 : index
    %0 = vector.load %arg3[%c0, %c0_0] : memref<32x128xf32, #tpu.memory_space<vmem>>, vector<32x128xf32>
    %c0_1 = arith.constant 0 : index
    %c0_2 = arith.constant 0 : index
    %1 = vector.load %arg4[%c0_1, %c0_2] : memref<776x128xf32, #tpu.memory_space<vmem>>, vector<256x128xf32>
    %c256 = arith.constant 256 : index
    %c0_3 = arith.constant 0 : index
    %2 = vector.load %arg4[%c256, %c0_3] : memref<776x128xf32, #tpu.memory_space<vmem>>, vector<256x128xf32>
    %c512 = arith.constant 512 : index
    %c0_4 = arith.constant 0 : index
    %3 = vector.load %arg4[%c512, %c0_4] : memref<776x128xf32, #tpu.memory_space<vmem>>, vector<256x128xf32>
    %c768 = arith.constant 768 : index
    %c0_5 = arith.constant 0 : index
    %4 = vector.load %arg4[%c768, %c0_5] : memref<776x128xf32, #tpu.memory_space<vmem>>, vector<8x128xf32>
    %5 = vector.extract_strided_slice %4 {offsets = [0, 0], sizes = [1, 128], strides = [1, 1]} : vector<8x128xf32> to vector<1x128xf32>
    %6 = vector.extract_strided_slice %4 {offsets = [1, 0], sizes = [1, 128], strides = [1, 1]} : vector<8x128xf32> to vector<1x128xf32>
    %7 = vector.extract_strided_slice %4 {offsets = [2, 0], sizes = [1, 128], strides = [1, 1]} : vector<8x128xf32> to vector<1x128xf32>
    %8 = vector.extract_strided_slice %4 {offsets = [3, 0], sizes = [1, 128], strides = [1, 1]} : vector<8x128xf32> to vector<1x128xf32>
    %9 = vector.extract_strided_slice %4 {offsets = [4, 0], sizes = [1, 1], strides = [1, 1]} : vector<8x128xf32> to vector<1x1xf32>
    %c0_6 = arith.constant 0 : index
    %c0_7 = arith.constant 0 : index
    %10 = vector.load %arg2[%c0_6, %c0_7] : memref<32x128xf32, #tpu.memory_space<vmem>>, vector<32x128xf32>
    %c0_8 = arith.constant 0 : index
    %c0_9 = arith.constant 0 : index
    %c0_10 = arith.constant 0 : index
    %11 = vector.load %arg1[%c0_8, %c0_9, %c0_10] : memref<2x16x16xf32, #tpu.memory_space<vmem>>, vector<1x16x16xf32>
    %12 = vector.shape_cast %11 : vector<1x16x16xf32> to vector<16x16xf32>
    %13 = vector.extract_strided_slice %10 {offsets = [0, 0], sizes = [16, 128], strides = [1, 1]} : vector<32x128xf32> to vector<16x128xf32>
    %cst = arith.constant dense<0.000000e+00> : vector<16x128xf32>
    %14 = tpu.matmul %12, %13, %cst {dimension_numbers = #tpu.dot_dimension_numbers<[1], [0], [0], [1], [0, 0, 1, 1], [], []>} : vector<16x16xf32>, vector<16x128xf32>, vector<16x128xf32> -> vector<16x128xf32>
    %c1 = arith.constant 1 : index
    %c0_11 = arith.constant 0 : index
    %c0_12 = arith.constant 0 : index
    %15 = vector.load %arg1[%c1, %c0_11, %c0_12] : memref<2x16x16xf32, #tpu.memory_space<vmem>>, vector<1x16x16xf32>
    %16 = vector.shape_cast %15 : vector<1x16x16xf32> to vector<16x16xf32>
    %17 = vector.extract_strided_slice %10 {offsets = [16, 0], sizes = [16, 128], strides = [1, 1]} : vector<32x128xf32> to vector<16x128xf32>
    %cst_13 = arith.constant dense<0.000000e+00> : vector<16x128xf32>
    %18 = tpu.matmul %16, %17, %cst_13 {dimension_numbers = #tpu.dot_dimension_numbers<[1], [0], [0], [1], [0, 0, 1, 1], [], []>} : vector<16x16xf32>, vector<16x128xf32>, vector<16x128xf32> -> vector<16x128xf32>
    %19 = tpu.concatenate %14, %18 in 0 : vector<16x128xf32>, vector<16x128xf32> -> vector<32x128xf32>
    %20 = tpu.concatenate %10, %19 in 1 : vector<32x128xf32>, vector<32x128xf32> -> vector<32x256xf32>
    %cst_14 = arith.constant dense<0.000000e+00> : vector<32x128xf32>
    %21 = tpu.matmul %20, %1, %cst_14 {dimension_numbers = #tpu.dot_dimension_numbers<[1], [0], [0], [1], [0, 0, 1, 1], [], []>} : vector<32x256xf32>, vector<256x128xf32>, vector<32x128xf32> -> vector<32x128xf32>
    %22 = vector.broadcast %5 : vector<1x128xf32> to vector<32x128xf32>
    %23 = arith.addf %21, %22 : vector<32x128xf32>
    %cst_15 = arith.constant 0.000000e+00 : f32
    %24 = vector.broadcast %cst_15 : f32 to vector<32x128xf32>
    %25 = arith.maximumf %23, %24 : vector<32x128xf32>
    %26 = arith.mulf %25, %0 : vector<32x128xf32>
    %c0_16 = arith.constant 0 : index
    %c0_17 = arith.constant 0 : index
    %c0_18 = arith.constant 0 : index
    %27 = vector.load %arg1[%c0_16, %c0_17, %c0_18] : memref<2x16x16xf32, #tpu.memory_space<vmem>>, vector<1x16x16xf32>
    %28 = vector.shape_cast %27 : vector<1x16x16xf32> to vector<16x16xf32>
    %29 = vector.extract_strided_slice %26 {offsets = [0, 0], sizes = [16, 128], strides = [1, 1]} : vector<32x128xf32> to vector<16x128xf32>
    %cst_19 = arith.constant dense<0.000000e+00> : vector<16x128xf32>
    %30 = tpu.matmul %28, %29, %cst_19 {dimension_numbers = #tpu.dot_dimension_numbers<[1], [0], [0], [1], [0, 0, 1, 1], [], []>} : vector<16x16xf32>, vector<16x128xf32>, vector<16x128xf32> -> vector<16x128xf32>
    %c1_20 = arith.constant 1 : index
    %c0_21 = arith.constant 0 : index
    %c0_22 = arith.constant 0 : index
    %31 = vector.load %arg1[%c1_20, %c0_21, %c0_22] : memref<2x16x16xf32, #tpu.memory_space<vmem>>, vector<1x16x16xf32>
    %32 = vector.shape_cast %31 : vector<1x16x16xf32> to vector<16x16xf32>
    %33 = vector.extract_strided_slice %26 {offsets = [16, 0], sizes = [16, 128], strides = [1, 1]} : vector<32x128xf32> to vector<16x128xf32>
    %cst_23 = arith.constant dense<0.000000e+00> : vector<16x128xf32>
    %34 = tpu.matmul %32, %33, %cst_23 {dimension_numbers = #tpu.dot_dimension_numbers<[1], [0], [0], [1], [0, 0, 1, 1], [], []>} : vector<16x16xf32>, vector<16x128xf32>, vector<16x128xf32> -> vector<16x128xf32>
    %35 = tpu.concatenate %30, %34 in 0 : vector<16x128xf32>, vector<16x128xf32> -> vector<32x128xf32>
    %36 = tpu.concatenate %26, %35 in 1 : vector<32x128xf32>, vector<32x128xf32> -> vector<32x256xf32>
    %cst_24 = arith.constant dense<0.000000e+00> : vector<32x128xf32>
    %37 = tpu.matmul %36, %2, %cst_24 {dimension_numbers = #tpu.dot_dimension_numbers<[1], [0], [0], [1], [0, 0, 1, 1], [], []>} : vector<32x256xf32>, vector<256x128xf32>, vector<32x128xf32> -> vector<32x128xf32>
    %38 = vector.broadcast %6 : vector<1x128xf32> to vector<32x128xf32>
    %39 = arith.addf %37, %38 : vector<32x128xf32>
    %cst_25 = arith.constant 0.000000e+00 : f32
    %40 = vector.broadcast %cst_25 : f32 to vector<32x128xf32>
    %41 = arith.maximumf %39, %40 : vector<32x128xf32>
    %42 = arith.mulf %41, %0 : vector<32x128xf32>
    %c0_26 = arith.constant 0 : index
    %c0_27 = arith.constant 0 : index
    %c0_28 = arith.constant 0 : index
    %43 = vector.load %arg1[%c0_26, %c0_27, %c0_28] : memref<2x16x16xf32, #tpu.memory_space<vmem>>, vector<1x16x16xf32>
    %44 = vector.shape_cast %43 : vector<1x16x16xf32> to vector<16x16xf32>
    %45 = vector.extract_strided_slice %42 {offsets = [0, 0], sizes = [16, 128], strides = [1, 1]} : vector<32x128xf32> to vector<16x128xf32>
    %cst_29 = arith.constant dense<0.000000e+00> : vector<16x128xf32>
    %46 = tpu.matmul %44, %45, %cst_29 {dimension_numbers = #tpu.dot_dimension_numbers<[1], [0], [0], [1], [0, 0, 1, 1], [], []>} : vector<16x16xf32>, vector<16x128xf32>, vector<16x128xf32> -> vector<16x128xf32>
    %c1_30 = arith.constant 1 : index
    %c0_31 = arith.constant 0 : index
    %c0_32 = arith.constant 0 : index
    %47 = vector.load %arg1[%c1_30, %c0_31, %c0_32] : memref<2x16x16xf32, #tpu.memory_space<vmem>>, vector<1x16x16xf32>
    %48 = vector.shape_cast %47 : vector<1x16x16xf32> to vector<16x16xf32>
    %49 = vector.extract_strided_slice %42 {offsets = [16, 0], sizes = [16, 128], strides = [1, 1]} : vector<32x128xf32> to vector<16x128xf32>
    %cst_33 = arith.constant dense<0.000000e+00> : vector<16x128xf32>
    %50 = tpu.matmul %48, %49, %cst_33 {dimension_numbers = #tpu.dot_dimension_numbers<[1], [0], [0], [1], [0, 0, 1, 1], [], []>} : vector<16x16xf32>, vector<16x128xf32>, vector<16x128xf32> -> vector<16x128xf32>
    %51 = tpu.concatenate %46, %50 in 0 : vector<16x128xf32>, vector<16x128xf32> -> vector<32x128xf32>
    %52 = tpu.concatenate %42, %51 in 1 : vector<32x128xf32>, vector<32x128xf32> -> vector<32x256xf32>
    %cst_34 = arith.constant dense<0.000000e+00> : vector<32x128xf32>
    %53 = tpu.matmul %52, %3, %cst_34 {dimension_numbers = #tpu.dot_dimension_numbers<[1], [0], [0], [1], [0, 0, 1, 1], [], []>} : vector<32x256xf32>, vector<256x128xf32>, vector<32x128xf32> -> vector<32x128xf32>
    %54 = vector.broadcast %7 : vector<1x128xf32> to vector<32x128xf32>
    %55 = arith.addf %53, %54 : vector<32x128xf32>
    %cst_35 = arith.constant 0.000000e+00 : f32
    %56 = vector.broadcast %cst_35 : f32 to vector<32x128xf32>
    %57 = arith.maximumf %55, %56 : vector<32x128xf32>
    %58 = arith.mulf %57, %0 : vector<32x128xf32>
    %59 = vector.extract_strided_slice %58 {offsets = [0, 0], sizes = [16, 128], strides = [1, 1]} : vector<32x128xf32> to vector<16x128xf32>
    %cst_36 = arith.constant dense<0xFF800000> : vector<128xf32>
    %60 = vector.multi_reduction <maximumf>, %59, %cst_36 [0] : vector<16x128xf32> to vector<128xf32>
    %61 = vector.shape_cast %60 : vector<128xf32> to vector<1x128xf32>
    %62 = vector.extract_strided_slice %58 {offsets = [16, 0], sizes = [16, 128], strides = [1, 1]} : vector<32x128xf32> to vector<16x128xf32>
    %cst_37 = arith.constant dense<0xFF800000> : vector<128xf32>
    %63 = vector.multi_reduction <maximumf>, %62, %cst_37 [0] : vector<16x128xf32> to vector<128xf32>
    %64 = vector.shape_cast %63 : vector<128xf32> to vector<1x128xf32>
    %65 = tpu.concatenate %61, %64 in 0 : vector<1x128xf32>, vector<1x128xf32> -> vector<2x128xf32>
    %66 = vector.broadcast %8 : vector<1x128xf32> to vector<2x128xf32>
    %67 = arith.mulf %65, %66 : vector<2x128xf32>
    %cst_38 = arith.constant dense<0.000000e+00> : vector<2xf32>
    %68 = vector.multi_reduction <add>, %67, %cst_38 [1] : vector<2x128xf32> to vector<2xf32>
    %69 = vector.shape_cast %68 : vector<2xf32> to vector<2x1xf32>
    %70 = vector.broadcast %9 : vector<1x1xf32> to vector<2x1xf32>
    %71 = arith.addf %69, %70 : vector<2x1xf32>
    %c0_39 = arith.constant 0 : index
    %c0_40 = arith.constant 0 : index
    %72 = vector.load %arg5[%c0_39, %c0_40] : memref<2x1xf32, #tpu.memory_space<vmem>>, vector<2x1xf32>
    tpu.vector_store %arg5[%c0_39, %c0_40], %71 {strides = array<i32>} : memref<2x1xf32, #tpu.memory_space<vmem>>, vector<2x1xf32>,
    return
  }
  func.func @transform_0(%arg0: i32) -> (i32, i32, i32) {
    %c0_i32 = arith.constant 0 : i32
    %c0_i32_0 = arith.constant 0 : i32
    %c0_i32_1 = arith.constant 0 : i32
    %c0_i32_2 = arith.constant 0 : i32
    return %c0_i32, %c0_i32_0, %c0_i32_1 : i32, i32, i32
  }
  func.func @transform_1(%arg0: i32) -> (i32, i32) {
    %c0_i32 = arith.constant 0 : i32
    %c0_i32_0 = arith.constant 0 : i32
    %c0_i32_1 = arith.constant 0 : i32
    return %c0_i32, %c0_i32_0 : i32, i32
  }
  func.func @transform_2(%arg0: i32) -> (i32, i32) {
    %c0_i32 = arith.constant 0 : i32
    %c0_i32_0 = arith.constant 0 : i32
    %c0_i32_1 = arith.constant 0 : i32
    return %c0_i32, %c0_i32_0 : i32, i32
  }
  func.func @transform_3(%arg0: i32) -> (i32, i32) {
    %c0_i32 = arith.constant 0 : i32
    %c0_i32_0 = arith.constant 0 : i32
    %c0_i32_1 = arith.constant 0 : i32
    return %c0_i32, %c0_i32_0 : i32, i32
  }
  func.func @transform_4(%arg0: i32) -> (i32, i32) {
    %c0_i32 = arith.constant 0 : i32
    %c0_i32_0 = arith.constant 0 : i32
    %c0_i32_1 = arith.constant 0 : i32
    return %c0_i32, %c0_i32_0 : i32, i32
  }
}

</mosaic_0001>

<llo_original>
// kernel: toy_graphsage_forward.1
$region0: #{toy_graphsage_forward.1}
  #allocation0 [shape = 'u32[]', space=smem, size = 0x4, offset = 0x4, fixed_abs, tag = 'smem constant byte address 0x4 - core index']
  #allocation1 [shape = 'u32[144,128]{1,0:T(1,128)}', space=vmem, size = 0x12000, scoped, tag = 'internal scratch']
  %s0 = inlined_call_operand.vmem [shape: f32[2,16,16], index: 0, kind: input, shape index: {}]
  %s1 = inlined_call_operand.vmem [shape: f32[32,128], index: 1, kind: input, shape index: {}]
  %s2 = inlined_call_operand.vmem [shape: f32[32,128], index: 2, kind: input, shape index: {}]
  %s3 = inlined_call_operand.hbm [shape: f32[776,128], index: 3, kind: input, shape index: {}]
  %s4 = inlined_call_operand.vmem [shape: f32[2,1], index: 4, kind: output, shape index: {}]
  %s5 = sld [smem:[#allocation0]]
  $region30: #{toy_graphsage_forward.1} parent=0
    _
  %s7 = ssub.s32 1, %s5
  %s8 = scalar_select 0, %s7, %s5
  $region1: #{toy_graphsage_forward.1} parent=0
    #allocation2 [shape = 'u8[397312]{0}', space=vmem, size = 0x61000, scoped, tag = 'input window, operand 3, single buffered']
    #allocation3 [shape = 's32[1]{0}', space=sflag, size = 0x4, scoped, tag = 'scoped memory for toy_graphsage_forward.1']
    %9 = vsyncpa [#allocation3], 0
    // Predicated region
    $region2: #{toy_graphsage_forward.1} parent=1 // pred_check
      _
    $region3: #{toy_graphsage_forward.1} parent=1 // pred_check_branch
      %11 = sbr.rel (0) target = $region5
    $region4: #{toy_graphsage_forward.1} parent=1 // pred_region
      _
    $region5: #{toy_graphsage_forward.1} parent=1 // pred_fallthru
      _
    // Predicated region
    $region6: #{toy_graphsage_forward.1} parent=1 // pred_check
      _
    $region7: #{toy_graphsage_forward.1} parent=1 // pred_check_branch
      %13 = sbr.rel (0) target = $region9
    $region8: #{toy_graphsage_forward.1} parent=1 // pred_region
      _
    $region9: #{toy_graphsage_forward.1} parent=1 // pred_fallthru
      _
    // Predicated region
    $region10: #{toy_graphsage_forward.1} parent=1 // pred_check
      _
    $region11: #{toy_graphsage_forward.1} parent=1 // pred_check_branch
      %15 = sbr.rel (0) target = $region13
    $region12: #{toy_graphsage_forward.1} parent=1 // pred_region
      _
    $region13: #{toy_graphsage_forward.1} parent=1 // pred_fallthru
      _
    // Predicated region
    $region14: #{toy_graphsage_forward.1} parent=1 // pred_check
      _
    $region15: #{toy_graphsage_forward.1} parent=1 // pred_check_branch
      %17 = sbr.rel (0) target = $region17
    $region16: #{toy_graphsage_forward.1} parent=1 // pred_region
      %s19 = ssub.s32 12416, 12416
      %20 = vsyncadd [#allocation3], %s19
      %s21 = sshll.u32 [#allocation2], 4
      %s22 = int_to_ptr.vmem [resolvable:$true] %s21
      %27 = dma.hbm_to_vmem [thread:$0]  %s3, 12416, %s22, [#allocation3], 128, 128, 8
    $region17: #{toy_graphsage_forward.1} parent=1 // pred_fallthru
      _
    // Predicated region
    $region18: #{toy_graphsage_forward.1} parent=1 // pred_check
      _
    $region19: #{toy_graphsage_forward.1} parent=1 // pred_check_branch
      %29 = sbr.rel (0) target = $region21
    $region20: #{toy_graphsage_forward.1} parent=1 // pred_region
      %30 = dma.done [#allocation3], 12416
    $region21: #{toy_graphsage_forward.1} parent=1 // pred_fallthru
      _
    %v31 = vld [vmem:[%s2] sm:$0xff]
    %v32 = vld [vmem:[%s2 + $0x8] sm:$0xff]
    %v33 = vld [vmem:[%s2 + $0x10] sm:$0xff]
    %v34 = vld [vmem:[%s2 + $0x18] sm:$0xff]
    %v35 = vld [vmem:[#allocation2] sm:$0xff]
    %v36 = vld [vmem:[#allocation2 + $0x8] sm:$0xff]
    %v37 = vld [vmem:[#allocation2 + $0x10] sm:$0xff]
    %v38 = vld [vmem:[#allocation2 + $0x18] sm:$0xff]
    %v39 = vld [vmem:[#allocation2 + $0x20] sm:$0xff]
    %v40 = vld [vmem:[#allocation2 + $0x28] sm:$0xff]
    %v41 = vld [vmem:[#allocation2 + $0x30] sm:$0xff]
    %v42 = vld [vmem:[#allocation2 + $0x38] sm:$0xff]
    %v43 = vld [vmem:[#allocation2 + $0x40] sm:$0xff]
    %v44 = vld [vmem:[#allocation2 + $0x48] sm:$0xff]
    %v45 = vld [vmem:[#allocation2 + $0x50] sm:$0xff]
    %v46 = vld [vmem:[#allocation2 + $0x58] sm:$0xff]
    %v47 = vld [vmem:[#allocation2 + $0x60] sm:$0xff]
    %v48 = vld [vmem:[#allocation2 + $0x68] sm:$0xff]
    %v49 = vld [vmem:[#allocation2 + $0x70] sm:$0xff]
    %v50 = vld [vmem:[#allocation2 + $0x78] sm:$0xff]
    %v51 = vld [vmem:[#allocation2 + $0x80] sm:$0xff]
    %v52 = vld [vmem:[#allocation2 + $0x88] sm:$0xff]
    %v53 = vld [vmem:[#allocation2 + $0x90] sm:$0xff]
    %v54 = vld [vmem:[#allocation2 + $0x98] sm:$0xff]
    %v55 = vld [vmem:[#allocation2 + $0xa0] sm:$0xff]
    %v56 = vld [vmem:[#allocation2 + $0xa8] sm:$0xff]
    %v57 = vld [vmem:[#allocation2 + $0xb0] sm:$0xff]
    %v58 = vld [vmem:[#allocation2 + $0xb8] sm:$0xff]
    %v59 = vld [vmem:[#allocation2 + $0xc0] sm:$0xff]
    %v60 = vld [vmem:[#allocation2 + $0xc8] sm:$0xff]
    %v61 = vld [vmem:[#allocation2 + $0xd0] sm:$0xff]
    %v62 = vld [vmem:[#allocation2 + $0xd8] sm:$0xff]
    %v63 = vld [vmem:[#allocation2 + $0xe0] sm:$0xff]
    %v64 = vld [vmem:[#allocation2 + $0xe8] sm:$0xff]
    %v65 = vld [vmem:[#allocation2 + $0xf0] sm:$0xff]
    %v66 = vld [vmem:[#allocation2 + $0xf8] sm:$0xff]
    %v67 = vld [vmem:[#allocation2 + $0x100] sm:$0xff]
    %v68 = vld [vmem:[#allocation2 + $0x108] sm:$0xff]
    %v69 = vld [vmem:[#allocation2 + $0x110] sm:$0xff]
    %v70 = vld [vmem:[#allocation2 + $0x118] sm:$0xff]
    %v71 = vld [vmem:[#allocation2 + $0x120] sm:$0xff]
    %v72 = vld [vmem:[#allocation2 + $0x128] sm:$0xff]
    %v73 = vld [vmem:[#allocation2 + $0x130] sm:$0xff]
    %v74 = vld [vmem:[#allocation2 + $0x138] sm:$0xff]
    %v75 = vld [vmem:[#allocation2 + $0x140] sm:$0xff]
    %v76 = vld [vmem:[#allocation2 + $0x148] sm:$0xff]
    %v77 = vld [vmem:[#allocation2 + $0x150] sm:$0xff]
    %v78 = vld [vmem:[#allocation2 + $0x158] sm:$0xff]
    %v79 = vld [vmem:[#allocation2 + $0x160] sm:$0xff]
    %v80 = vld [vmem:[#allocation2 + $0x168] sm:$0xff]
    %v81 = vld [vmem:[#allocation2 + $0x170] sm:$0xff]
    %v82 = vld [vmem:[#allocation2 + $0x178] sm:$0xff]
    %v83 = vld [vmem:[#allocation2 + $0x180] sm:$0xff]
    %v84 = vld [vmem:[#allocation2 + $0x188] sm:$0xff]
    %v85 = vld [vmem:[#allocation2 + $0x190] sm:$0xff]
    %v86 = vld [vmem:[#allocation2 + $0x198] sm:$0xff]
    %v87 = vld [vmem:[#allocation2 + $0x1a0] sm:$0xff]
    %v88 = vld [vmem:[#allocation2 + $0x1a8] sm:$0xff]
    %v89 = vld [vmem:[#allocation2 + $0x1b0] sm:$0xff]
    %v90 = vld [vmem:[#allocation2 + $0x1b8] sm:$0xff]
    %v91 = vld [vmem:[#allocation2 + $0x1c0] sm:$0xff]
    %v92 = vld [vmem:[#allocation2 + $0x1c8] sm:$0xff]
    %v93 = vld [vmem:[#allocation2 + $0x1d0] sm:$0xff]
    %v94 = vld [vmem:[#allocation2 + $0x1d8] sm:$0xff]
    %v95 = vld [vmem:[#allocation2 + $0x1e0] sm:$0xff]
    %v96 = vld [vmem:[#allocation2 + $0x1e8] sm:$0xff]
    %v97 = vld [vmem:[#allocation2 + $0x1f0] sm:$0xff]
    %v98 = vld [vmem:[#allocation2 + $0x1f8] sm:$0xff]
    %v99 = vld [vmem:[#allocation2 + $0x200] sm:$0xff]
    %v100 = vld [vmem:[#allocation2 + $0x208] sm:$0xff]
    %v101 = vld [vmem:[#allocation2 + $0x210] sm:$0xff]
    %v102 = vld [vmem:[#allocation2 + $0x218] sm:$0xff]
    %v103 = vld [vmem:[#allocation2 + $0x220] sm:$0xff]
    %v104 = vld [vmem:[#allocation2 + $0x228] sm:$0xff]
    %v105 = vld [vmem:[#allocation2 + $0x230] sm:$0xff]
    %v106 = vld [vmem:[#allocation2 + $0x238] sm:$0xff]
    %v107 = vld [vmem:[#allocation2 + $0x240] sm:$0xff]
    %v108 = vld [vmem:[#allocation2 + $0x248] sm:$0xff]
    %v109 = vld [vmem:[#allocation2 + $0x250] sm:$0xff]
    %v110 = vld [vmem:[#allocation2 + $0x258] sm:$0xff]
    %v111 = vld [vmem:[#allocation2 + $0x260] sm:$0xff]
    %v112 = vld [vmem:[#allocation2 + $0x268] sm:$0xff]
    %v113 = vld [vmem:[#allocation2 + $0x270] sm:$0xff]
    %v114 = vld [vmem:[#allocation2 + $0x278] sm:$0xff]
    %v115 = vld [vmem:[#allocation2 + $0x280] sm:$0xff]
    %v116 = vld [vmem:[#allocation2 + $0x288] sm:$0xff]
    %v117 = vld [vmem:[#allocation2 + $0x290] sm:$0xff]
    %v118 = vld [vmem:[#allocation2 + $0x298] sm:$0xff]
    %v119 = vld [vmem:[#allocation2 + $0x2a0] sm:$0xff]
    %v120 = vld [vmem:[#allocation2 + $0x2a8] sm:$0xff]
    %v121 = vld [vmem:[#allocation2 + $0x2b0] sm:$0xff]
    %v122 = vld [vmem:[#allocation2 + $0x2b8] sm:$0xff]
    %v123 = vld [vmem:[#allocation2 + $0x2c0] sm:$0xff]
    %v124 = vld [vmem:[#allocation2 + $0x2c8] sm:$0xff]
    %v125 = vld [vmem:[#allocation2 + $0x2d0] sm:$0xff]
    %v126 = vld [vmem:[#allocation2 + $0x2d8] sm:$0xff]
    %v127 = vld [vmem:[#allocation2 + $0x2e0] sm:$0xff]
    %v128 = vld [vmem:[#allocation2 + $0x2e8] sm:$0xff]
    %v129 = vld [vmem:[#allocation2 + $0x2f0] sm:$0xff]
    %v130 = vld [vmem:[#allocation2 + $0x2f8] sm:$0xff]
    %v131 = vld [vmem:[#allocation2 + $0x300] sm:$0xff]
    %v132 = vld [vmem:[%s1] sm:$0xff]
    %v133 = vld [vmem:[%s1 + $0x8] sm:$0xff]
    %v134 = vld [vmem:[%s1 + $0x10] sm:$0xff]
    %v135 = vld [vmem:[%s1 + $0x18] sm:$0xff]
    %v136 = vld [vmem:[%s0] sm:$0xff]
    %v137 = vld [vmem:[%s0 + $0x8] sm:$0xff]
    %vm138 = vcmask 130048
    %v140 = vsel %vm138, %v136, 0
    %v143 = vsel %vm138, %v137, 0
    %145 = vmatprep.subr.mxu0 0.0
    %146 = vmatpush1.msra.mxu0 0.0
    %147 = vmatprep.subr.mxu0 0.0
    %148 = vmatpush1.msra.mxu0 0.0
    %149 = vmatprep.subr.mxu0 0.0
    %150 = vmatpush1.msra.mxu0 0.0
    %151 = vmatprep.subr.mxu0 0.0
    %152 = vmatpush1.msra.mxu0 0.0
    %153 = vmatprep.subr.mxu0 0.0
    %154 = vmatpush1.msra.mxu0 0.0
    %155 = vmatprep.subr.mxu0 0.0
    %156 = vmatpush1.msra.mxu0 0.0
    %157 = vmatprep.subr.mxu0 0.0
    %158 = vmatpush1.msra.mxu0 0.0
    %159 = vmatprep.subr.mxu0 0.0
    %160 = vmatpush1.msra.mxu0 0.0
    %161 = vmatprep.subr.mxu0 0.0
    %162 = vmatpush1.msra.mxu0 0.0
    %163 = vmatprep.subr.mxu0 0.0
    %164 = vmatpush1.msra.mxu0 0.0
    %165 = vmatprep.subr.mxu0 0.0
    %166 = vmatpush1.msra.mxu0 0.0
    %167 = vmatprep.subr.mxu0 0.0
    %168 = vmatpush1.msra.mxu0 0.0
    %169 = vmatprep.subr.mxu0 0.0
    %170 = vmatpush1.msra.mxu0 0.0
    %171 = vmatprep.subr.mxu0 0.0
    %172 = vmatpush1.msra.mxu0 0.0
    %173 = vmatprep.subr.mxu0 0.0
    %174 = vmatpush1.msra.mxu0 %v133
    %175 = vmatprep.subr.mxu0 0.0
    %176 = vmatpush1.msra.mxu0 %v132
    %177 = vmatprep.subr.mxu0 0.0
    %178 = vmatpush2.msra.mxu0 0.0
    %179 = vmatprep.subr.mxu0 0.0
    %180 = vmatpush2.msra.mxu0 0.0
    %181 = vmatprep.subr.mxu0 0.0
    %182 = vmatpush2.msra.mxu0 0.0
    %183 = vmatprep.subr.mxu0 0.0
    %184 = vmatpush2.msra.mxu0 0.0
    %185 = vmatprep.subr.mxu0 0.0
    %186 = vmatpush2.msra.mxu0 0.0
    %187 = vmatprep.subr.mxu0 0.0
    %188 = vmatpush2.msra.mxu0 0.0
    %189 = vmatprep.subr.mxu0 0.0
    %190 = vmatpush2.msra.mxu0 0.0
    %191 = vmatprep.subr.mxu0 0.0
    %192 = vmatpush2.msra.mxu0 0.0
    %193 = vmatprep.subr.mxu0 0.0
    %194 = vmatpush2.msra.mxu0 0.0
    %195 = vmatprep.subr.mxu0 0.0
    %196 = vmatpush2.msra.mxu0 0.0
    %197 = vmatprep.subr.mxu0 0.0
    %198 = vmatpush2.msra.mxu0 0.0
    %199 = vmatprep.subr.mxu0 0.0
    %200 = vmatpush2.msra.mxu0 0.0
    %201 = vmatprep.subr.mxu0 0.0
    %202 = vmatpush2.msra.mxu0 0.0
    %203 = vmatprep.subr.mxu0 0.0
    %204 = vmatpush2.msra.mxu0 0.0
    %205 = vmatprep.subr.mxu0 0.0
    %206 = vmatpush2.msra.mxu0 0.0
    %207 = vmatprep.subr.mxu0 0.0
    %208 = vmatpush2.msra.mxu0 0.0
    %209 = vmatprep.mubr.f32.mxu0 0.0
    %210 = vmatmul.mubr.f32.gmra.mxu0 %v140
    %v211 = vpop.f32.mrf.mxu0
    %v212 = vadd.f32 0.0, %v211
    %v213 = vpop.f32.mrf.mxu0
    %214 = vmatprep.mubr.f32.mxu0 0.0
    %215 = vmatmul.mubr.f32.gmra.mxu0 %v143
    %v216 = vpop.f32.mrf.mxu0
    %v217 = vadd.f32 0.0, %v216
    %v218 = vpop.f32.mrf.mxu0
    %219 = vdwg.mxu0
    %s220 = scalar_lea.vmem %s0, 16
    %v221 = vld [vmem:[%s220] sm:$0xff]
    %v222 = vld [vmem:[%s220 + $0x8] sm:$0xff]
    %v224 = vsel %vm138, %v221, 0
    %v227 = vsel %vm138, %v222, 0
    %229 = vmatprep.subr.mxu0 0.0
    %230 = vmatpush1.msra.mxu0 0.0
    %231 = vmatprep.subr.mxu0 0.0
    %232 = vmatpush1.msra.mxu0 0.0
    %233 = vmatprep.subr.mxu0 0.0
    %234 = vmatpush1.msra.mxu0 0.0
    %235 = vmatprep.subr.mxu0 0.0
    %236 = vmatpush1.msra.mxu0 0.0
    %237 = vmatprep.subr.mxu0 0.0
    %238 = vmatpush1.msra.mxu0 0.0
    %239 = vmatprep.subr.mxu0 0.0
    %240 = vmatpush1.msra.mxu0 0.0
    %241 = vmatprep.subr.mxu0 0.0
    %242 = vmatpush1.msra.mxu0 0.0
    %243 = vmatprep.subr.mxu0 0.0
    %244 = vmatpush1.msra.mxu0 0.0
    %245 = vmatprep.subr.mxu0 0.0
    %246 = vmatpush1.msra.mxu0 0.0
    %247 = vmatprep.subr.mxu0 0.0
    %248 = vmatpush1.msra.mxu0 0.0
    %249 = vmatprep.subr.mxu0 0.0
    %250 = vmatpush1.msra.mxu0 0.0
    %251 = vmatprep.subr.mxu0 0.0
    %252 = vmatpush1.msra.mxu0 0.0
    %253 = vmatprep.subr.mxu0 0.0
    %254 = vmatpush1.msra.mxu0 0.0
    %255 = vmatprep.subr.mxu0 0.0
    %256 = vmatpush1.msra.mxu0 0.0
    %257 = vmatprep.subr.mxu0 0.0
    %258 = vmatpush1.msra.mxu0 %v135
    %259 = vmatprep.subr.mxu0 0.0
    %260 = vmatpush1.msra.mxu0 %v134
    %261 = vmatprep.subr.mxu0 0.0
    %262 = vmatpush2.msra.mxu0 0.0
    %263 = vmatprep.subr.mxu0 0.0
    %264 = vmatpush2.msra.mxu0 0.0
    %265 = vmatprep.subr.mxu0 0.0
    %266 = vmatpush2.msra.mxu0 0.0
    %267 = vmatprep.subr.mxu0 0.0
    %268 = vmatpush2.msra.mxu0 0.0
    %269 = vmatprep.subr.mxu0 0.0
    %270 = vmatpush2.msra.mxu0 0.0
    %271 = vmatprep.subr.mxu0 0.0
    %272 = vmatpush2.msra.mxu0 0.0
    %273 = vmatprep.subr.mxu0 0.0
    %274 = vmatpush2.msra.mxu0 0.0
    %275 = vmatprep.subr.mxu0 0.0
    %276 = vmatpush2.msra.mxu0 0.0
    %277 = vmatprep.subr.mxu0 0.0
    %278 = vmatpush2.msra.mxu0 0.0
    %279 = vmatprep.subr.mxu0 0.0
    %280 = vmatpush2.msra.mxu0 0.0
    %281 = vmatprep.subr.mxu0 0.0
    %282 = vmatpush2.msra.mxu0 0.0
    %283 = vmatprep.subr.mxu0 0.0
    %284 = vmatpush2.msra.mxu0 0.0
    %285 = vmatprep.subr.mxu0 0.0
    %286 = vmatpush2.msra.mxu0 0.0
    %287 = vmatprep.subr.mxu0 0.0
    %288 = vmatpush2.msra.mxu0 0.0
    %289 = vmatprep.subr.mxu0 0.0
    %290 = vmatpush2.msra.mxu0 0.0
    %291 = vmatprep.subr.mxu0 0.0
    %292 = vmatpush2.msra.mxu0 0.0
    %293 = vmatprep.mubr.f32.mxu0 0.0
    %294 = vmatmul.mubr.f32.gmra.mxu0 %v224
    %v295 = vpop.f32.mrf.mxu0
    %v296 = vadd.f32 0.0, %v295
    %v297 = vpop.f32.mrf.mxu0
    %298 = vmatprep.mubr.f32.mxu0 0.0
    %299 = vmatmul.mubr.f32.gmra.mxu0 %v227
    %v300 = vpop.f32.mrf.mxu0
    %v301 = vadd.f32 0.0, %v300
    %v302 = vpop.f32.mrf.mxu0
    %303 = vdwg.mxu0
    %v304 = vlaneseq
    %v305 = vshrl.u32 %v304, 7
    %v306 = vsub.s32 0, %v305
    %v307 = vrot.slane %v131, %v306
    %308 = vmatprep.subr.mxu0 0.0
    %309 = vmatpush1.msra.mxu0 %v50
    %310 = vmatprep.subr.mxu0 0.0
    %311 = vmatpush1.msra.mxu0 %v49
    %312 = vmatprep.subr.mxu0 0.0
    %313 = vmatpush1.msra.mxu0 %v48
    %314 = vmatprep.subr.mxu0 0.0
    %315 = vmatpush1.msra.mxu0 %v47
    %316 = vmatprep.subr.mxu0 0.0
    %317 = vmatpush1.msra.mxu0 %v46
    %318 = vmatprep.subr.mxu0 0.0
    %319 = vmatpush1.msra.mxu0 %v45
    %320 = vmatprep.subr.mxu0 0.0
    %321 = vmatpush1.msra.mxu0 %v44
    %322 = vmatprep.subr.mxu0 0.0
    %323 = vmatpush1.msra.mxu0 %v43
    %324 = vmatprep.subr.mxu0 0.0
    %325 = vmatpush1.msra.mxu0 %v42
    %326 = vmatprep.subr.mxu0 0.0
    %327 = vmatpush1.msra.mxu0 %v41
    %328 = vmatprep.subr.mxu0 0.0
    %329 = vmatpush1.msra.mxu0 %v40
    %330 = vmatprep.subr.mxu0 0.0
    %331 = vmatpush1.msra.mxu0 %v39
    %332 = vmatprep.subr.mxu0 0.0
    %333 = vmatpush1.msra.mxu0 %v38
    %334 = vmatprep.subr.mxu0 0.0
    %335 = vmatpush1.msra.mxu0 %v37
    %336 = vmatprep.subr.mxu0 0.0
    %337 = vmatpush1.msra.mxu0 %v36
    %338 = vmatprep.subr.mxu0 0.0
    %339 = vmatpush1.msra.mxu0 %v35
    %340 = vmatprep.subr.mxu0 0.0
    %341 = vmatpush2.msra.mxu0 %v66
    %342 = vmatprep.subr.mxu0 0.0
    %343 = vmatpush2.msra.mxu0 %v65
    %344 = vmatprep.subr.mxu0 0.0
    %345 = vmatpush2.msra.mxu0 %v64
    %346 = vmatprep.subr.mxu0 0.0
    %347 = vmatpush2.msra.mxu0 %v63
    %348 = vmatprep.subr.mxu0 0.0
    %349 = vmatpush2.msra.mxu0 %v62
    %350 = vmatprep.subr.mxu0 0.0
    %351 = vmatpush2.msra.mxu0 %v61
    %352 = vmatprep.subr.mxu0 0.0
    %353 = vmatpush2.msra.mxu0 %v60
    %354 = vmatprep.subr.mxu0 0.0
    %355 = vmatpush2.msra.mxu0 %v59
    %356 = vmatprep.subr.mxu0 0.0
    %357 = vmatpush2.msra.mxu0 %v58
    %358 = vmatprep.subr.mxu0 0.0
    %359 = vmatpush2.msra.mxu0 %v57
    %360 = vmatprep.subr.mxu0 0.0
    %361 = vmatpush2.msra.mxu0 %v56
    %362 = vmatprep.subr.mxu0 0.0
    %363 = vmatpush2.msra.mxu0 %v55
    %364 = vmatprep.subr.mxu0 0.0
    %365 = vmatpush2.msra.mxu0 %v54
    %366 = vmatprep.subr.mxu0 0.0
    %367 = vmatpush2.msra.mxu0 %v53
    %368 = vmatprep.subr.mxu0 0.0
    %369 = vmatpush2.msra.mxu0 %v52
    %370 = vmatprep.subr.mxu0 0.0
    %371 = vmatpush2.msra.mxu0 %v51
    %372 = vmatprep.mubr.f32.mxu0 %v212
    %373 = vmatmul.mubr.f32.gmra.mxu0 %v132
    %v374 = vpop.f32.mrf.mxu0
    %v375 = vadd.f32 %v307, %v374
    %v376 = vpop.f32.mrf.mxu0
    %377 = vmatprep.mubr.f32.mxu0 %v217
    %378 = vmatmul.mubr.f32.gmra.mxu0 %v133
    %v379 = vpop.f32.mrf.mxu0
    %v380 = vadd.f32 %v307, %v379
    %v381 = vpop.f32.mrf.mxu0
    %382 = vmatprep.mubr.f32.mxu0 %v296
    %383 = vmatmul.mubr.f32.gmra.mxu0 %v134
    %v384 = vpop.f32.mrf.mxu0
    %v385 = vadd.f32 %v307, %v384
    %v386 = vpop.f32.mrf.mxu0
    %387 = vmatprep.mubr.f32.mxu0 %v301
    %388 = vmatmul.mubr.f32.gmra.mxu0 %v135
    %v389 = vpop.f32.mrf.mxu0
    %v390 = vadd.f32 %v307, %v389
    %v391 = vpop.f32.mrf.mxu0
    %392 = vdwg.mxu0
    %v393 = vmax.f32 %v375, 0.0
    %v394 = vmax.f32 %v380, 0.0
    %v395 = vmax.f32 %v385, 0.0
    %v396 = vmax.f32 %v390, 0.0
    %v397 = vmul.f32 %v393, %v31
    %v398 = vmul.f32 %v394, %v32
    %v399 = vmul.f32 %v395, %v33
    %v400 = vmul.f32 %v396, %v34
    %401 = vmatprep.subr.mxu0 0.0
    %402 = vmatpush1.msra.mxu0 0.0
    %403 = vmatprep.subr.mxu0 0.0
    %404 = vmatpush1.msra.mxu0 0.0
    %405 = vmatprep.subr.mxu0 0.0
    %406 = vmatpush1.msra.mxu0 0.0
    %407 = vmatprep.subr.mxu0 0.0
    %408 = vmatpush1.msra.mxu0 0.0
    %409 = vmatprep.subr.mxu0 0.0
    %410 = vmatpush1.msra.mxu0 0.0
    %411 = vmatprep.subr.mxu0 0.0
    %412 = vmatpush1.msra.mxu0 0.0
    %413 = vmatprep.subr.mxu0 0.0
    %414 = vmatpush1.msra.mxu0 0.0
    %415 = vmatprep.subr.mxu0 0.0
    %416 = vmatpush1.msra.mxu0 0.0
    %417 = vmatprep.subr.mxu0 0.0
    %418 = vmatpush1.msra.mxu0 0.0
    %419 = vmatprep.subr.mxu0 0.0
    %420 = vmatpush1.msra.mxu0 0.0
    %421 = vmatprep.subr.mxu0 0.0
    %422 = vmatpush1.msra.mxu0 0.0
    %423 = vmatprep.subr.mxu0 0.0
    %424 = vmatpush1.msra.mxu0 0.0
    %425 = vmatprep.subr.mxu0 0.0
    %426 = vmatpush1.msra.mxu0 0.0
    %427 = vmatprep.subr.mxu0 0.0
    %428 = vmatpush1.msra.mxu0 0.0
    %429 = vmatprep.subr.mxu0 0.0
    %430 = vmatpush1.msra.mxu0 %v398
    %431 = vmatprep.subr.mxu0 0.0
    %432 = vmatpush1.msra.mxu0 %v397
    %433 = vmatprep.subr.mxu0 0.0
    %434 = vmatpush2.msra.mxu0 0.0
    %435 = vmatprep.subr.mxu0 0.0
    %436 = vmatpush2.msra.mxu0 0.0
    %437 = vmatprep.subr.mxu0 0.0
    %438 = vmatpush2.msra.mxu0 0.0
    %439 = vmatprep.subr.mxu0 0.0
    %440 = vmatpush2.msra.mxu0 0.0
    %441 = vmatprep.subr.mxu0 0.0
    %442 = vmatpush2.msra.mxu0 0.0
    %443 = vmatprep.subr.mxu0 0.0
    %444 = vmatpush2.msra.mxu0 0.0
    %445 = vmatprep.subr.mxu0 0.0
    %446 = vmatpush2.msra.mxu0 0.0
    %447 = vmatprep.subr.mxu0 0.0
    %448 = vmatpush2.msra.mxu0 0.0
    %449 = vmatprep.subr.mxu0 0.0
    %450 = vmatpush2.msra.mxu0 0.0
    %451 = vmatprep.subr.mxu0 0.0
    %452 = vmatpush2.msra.mxu0 0.0
    %453 = vmatprep.subr.mxu0 0.0
    %454 = vmatpush2.msra.mxu0 0.0
    %455 = vmatprep.subr.mxu0 0.0
    %456 = vmatpush2.msra.mxu0 0.0
    %457 = vmatprep.subr.mxu0 0.0
    %458 = vmatpush2.msra.mxu0 0.0
    %459 = vmatprep.subr.mxu0 0.0
    %460 = vmatpush2.msra.mxu0 0.0
    %461 = vmatprep.subr.mxu0 0.0
    %462 = vmatpush2.msra.mxu0 0.0
    %463 = vmatprep.subr.mxu0 0.0
    %464 = vmatpush2.msra.mxu0 0.0
    %465 = vmatprep.mubr.f32.mxu0 0.0
    %466 = vmatmul.mubr.f32.gmra.mxu0 %v140
    %v467 = vpop.f32.mrf.mxu0
    %v468 = vadd.f32 0.0, %v467
    %v469 = vpop.f32.mrf.mxu0
    %470 = vmatprep.mubr.f32.mxu0 0.0
    %471 = vmatmul.mubr.f32.gmra.mxu0 %v143
    %v472 = vpop.f32.mrf.mxu0
    %v473 = vadd.f32 0.0, %v472
    %v474 = vpop.f32.mrf.mxu0
    %475 = vdwg.mxu0
    %476 = vmatprep.subr.mxu0 0.0
    %477 = vmatpush1.msra.mxu0 0.0
    %478 = vmatprep.subr.mxu0 0.0
    %479 = vmatpush1.msra.mxu0 0.0
    %480 = vmatprep.subr.mxu0 0.0
    %481 = vmatpush1.msra.mxu0 0.0
    %482 = vmatprep.subr.mxu0 0.0
    %483 = vmatpush1.msra.mxu0 0.0
    %484 = vmatprep.subr.mxu0 0.0
    %485 = vmatpush1.msra.mxu0 0.0
    %486 = vmatprep.subr.mxu0 0.0
    %487 = vmatpush1.msra.mxu0 0.0
    %488 = vmatprep.subr.mxu0 0.0
    %489 = vmatpush1.msra.mxu0 0.0
    %490 = vmatprep.subr.mxu0 0.0
    %491 = vmatpush1.msra.mxu0 0.0
    %492 = vmatprep.subr.mxu0 0.0
    %493 = vmatpush1.msra.mxu0 0.0
    %494 = vmatprep.subr.mxu0 0.0
    %495 = vmatpush1.msra.mxu0 0.0
    %496 = vmatprep.subr.mxu0 0.0
    %497 = vmatpush1.msra.mxu0 0.0
    %498 = vmatprep.subr.mxu0 0.0
    %499 = vmatpush1.msra.mxu0 0.0
    %500 = vmatprep.subr.mxu0 0.0
    %501 = vmatpush1.msra.mxu0 0.0
    %502 = vmatprep.subr.mxu0 0.0
    %503 = vmatpush1.msra.mxu0 0.0
    %504 = vmatprep.subr.mxu0 0.0
    %505 = vmatpush1.msra.mxu0 %v400
    %506 = vmatprep.subr.mxu0 0.0
    %507 = vmatpush1.msra.mxu0 %v399
    %508 = vmatprep.subr.mxu0 0.0
    %509 = vmatpush2.msra.mxu0 0.0
    %510 = vmatprep.subr.mxu0 0.0
    %511 = vmatpush2.msra.mxu0 0.0
    %512 = vmatprep.subr.mxu0 0.0
    %513 = vmatpush2.msra.mxu0 0.0
    %514 = vmatprep.subr.mxu0 0.0
    %515 = vmatpush2.msra.mxu0 0.0
    %516 = vmatprep.subr.mxu0 0.0
    %517 = vmatpush2.msra.mxu0 0.0
    %518 = vmatprep.subr.mxu0 0.0
    %519 = vmatpush2.msra.mxu0 0.0
    %520 = vmatprep.subr.mxu0 0.0
    %521 = vmatpush2.msra.mxu0 0.0
    %522 = vmatprep.subr.mxu0 0.0
    %523 = vmatpush2.msra.mxu0 0.0
    %524 = vmatprep.subr.mxu0 0.0
    %525 = vmatpush2.msra.mxu0 0.0
    %526 = vmatprep.subr.mxu0 0.0
    %527 = vmatpush2.msra.mxu0 0.0
    %528 = vmatprep.subr.mxu0 0.0
    %529 = vmatpush2.msra.mxu0 0.0
    %530 = vmatprep.subr.mxu0 0.0
    %531 = vmatpush2.msra.mxu0 0.0
    %532 = vmatprep.subr.mxu0 0.0
    %533 = vmatpush2.msra.mxu0 0.0
    %534 = vmatprep.subr.mxu0 0.0
    %535 = vmatpush2.msra.mxu0 0.0
    %536 = vmatprep.subr.mxu0 0.0
    %537 = vmatpush2.msra.mxu0 0.0
    %538 = vmatprep.subr.mxu0 0.0
    %539 = vmatpush2.msra.mxu0 0.0
    %540 = vmatprep.mubr.f32.mxu0 0.0
    %541 = vmatmul.mubr.f32.gmra.mxu0 %v224
    %v542 = vpop.f32.mrf.mxu0
    %v543 = vadd.f32 0.0, %v542
    %v544 = vpop.f32.mrf.mxu0
    %545 = vmatprep.mubr.f32.mxu0 0.0
    %546 = vmatmul.mubr.f32.gmra.mxu0 %v227
    %v547 = vpop.f32.mrf.mxu0
    %v548 = vadd.f32 0.0, %v547
    %v549 = vpop.f32.mrf.mxu0
    %550 = vdwg.mxu0
    %v551 = vlaneseq
    %v552 = vshrl.u32 %v551, 7
    %v553 = vsub.s32 1, %v552
    %v554 = vrot.slane %v131, %v553
    %555 = vmatprep.subr.mxu0 0.0
    %556 = vmatpush1.msra.mxu0 %v82
    %557 = vmatprep.subr.mxu0 0.0
    %558 = vmatpush1.msra.mxu0 %v81
    %559 = vmatprep.subr.mxu0 0.0
    %560 = vmatpush1.msra.mxu0 %v80
    %561 = vmatprep.subr.mxu0 0.0
    %562 = vmatpush1.msra.mxu0 %v79
    %563 = vmatprep.subr.mxu0 0.0
    %564 = vmatpush1.msra.mxu0 %v78
    %565 = vmatprep.subr.mxu0 0.0
    %566 = vmatpush1.msra.mxu0 %v77
    %567 = vmatprep.subr.mxu0 0.0
    %568 = vmatpush1.msra.mxu0 %v76
    %569 = vmatprep.subr.mxu0 0.0
    %570 = vmatpush1.msra.mxu0 %v75
    %571 = vmatprep.subr.mxu0 0.0
    %572 = vmatpush1.msra.mxu0 %v74
    %573 = vmatprep.subr.mxu0 0.0
    %574 = vmatpush1.msra.mxu0 %v73
    %575 = vmatprep.subr.mxu0 0.0
    %576 = vmatpush1.msra.mxu0 %v72
    %577 = vmatprep.subr.mxu0 0.0
    %578 = vmatpush1.msra.mxu0 %v71
    %579 = vmatprep.subr.mxu0 0.0
    %580 = vmatpush1.msra.mxu0 %v70
    %581 = vmatprep.subr.mxu0 0.0
    %582 = vmatpush1.msra.mxu0 %v69
    %583 = vmatprep.subr.mxu0 0.0
    %584 = vmatpush1.msra.mxu0 %v68
    %585 = vmatprep.subr.mxu0 0.0
    %586 = vmatpush1.msra.mxu0 %v67
    %587 = vmatprep.subr.mxu0 0.0
    %588 = vmatpush2.msra.mxu0 %v98
    %589 = vmatprep.subr.mxu0 0.0
    %590 = vmatpush2.msra.mxu0 %v97
    %591 = vmatprep.subr.mxu0 0.0
    %592 = vmatpush2.msra.mxu0 %v96
    %593 = vmatprep.subr.mxu0 0.0
    %594 = vmatpush2.msra.mxu0 %v95
    %595 = vmatprep.subr.mxu0 0.0
    %596 = vmatpush2.msra.mxu0 %v94
    %597 = vmatprep.subr.mxu0 0.0
    %598 = vmatpush2.msra.mxu0 %v93
    %599 = vmatprep.subr.mxu0 0.0
    %600 = vmatpush2.msra.mxu0 %v92
    %601 = vmatprep.subr.mxu0 0.0
    %602 = vmatpush2.msra.mxu0 %v91
    %603 = vmatprep.subr.mxu0 0.0
    %604 = vmatpush2.msra.mxu0 %v90
    %605 = vmatprep.subr.mxu0 0.0
    %606 = vmatpush2.msra.mxu0 %v89
    %607 = vmatprep.subr.mxu0 0.0
    %608 = vmatpush2.msra.mxu0 %v88
    %609 = vmatprep.subr.mxu0 0.0
    %610 = vmatpush2.msra.mxu0 %v87
    %611 = vmatprep.subr.mxu0 0.0
    %612 = vmatpush2.msra.mxu0 %v86
    %613 = vmatprep.subr.mxu0 0.0
    %614 = vmatpush2.msra.mxu0 %v85
    %615 = vmatprep.subr.mxu0 0.0
    %616 = vmatpush2.msra.mxu0 %v84
    %617 = vmatprep.subr.mxu0 0.0
    %618 = vmatpush2.msra.mxu0 %v83
    %619 = vmatprep.mubr.f32.mxu0 %v468
    %620 = vmatmul.mubr.f32.gmra.mxu0 %v397
    %v621 = vpop.f32.mrf.mxu0
    %v622 = vadd.f32 %v554, %v621
    %v623 = vpop.f32.mrf.mxu0
    %624 = vmatprep.mubr.f32.mxu0 %v473
    %625 = vmatmul.mubr.f32.gmra.mxu0 %v398
    %v626 = vpop.f32.mrf.mxu0
    %v627 = vadd.f32 %v554, %v626
    %v628 = vpop.f32.mrf.mxu0
    %629 = vmatprep.mubr.f32.mxu0 %v543
    %630 = vmatmul.mubr.f32.gmra.mxu0 %v399
    %v631 = vpop.f32.mrf.mxu0
    %v632 = vadd.f32 %v554, %v631
    %v633 = vpop.f32.mrf.mxu0
    %634 = vmatprep.mubr.f32.mxu0 %v548
    %635 = vmatmul.mubr.f32.gmra.mxu0 %v400
    %v636 = vpop.f32.mrf.mxu0
    %v637 = vadd.f32 %v554, %v636
    %v638 = vpop.f32.mrf.mxu0
    %639 = vdwg.mxu0
    %v640 = vmax.f32 %v622, 0.0
    %v641 = vmax.f32 %v627, 0.0
    %v642 = vmax.f32 %v632, 0.0
    %v643 = vmax.f32 %v637, 0.0
    %v644 = vmul.f32 %v640, %v31
    %v645 = vmul.f32 %v641, %v32
    %v646 = vmul.f32 %v642, %v33
    %v647 = vmul.f32 %v643, %v34
    %648 = vmatprep.subr.mxu0 0.0
    %649 = vmatpush1.msra.mxu0 0.0
    %650 = vmatprep.subr.mxu0 0.0
    %651 = vmatpush1.msra.mxu0 0.0
    %652 = vmatprep.subr.mxu0 0.0
    %653 = vmatpush1.msra.mxu0 0.0
    %654 = vmatprep.subr.mxu0 0.0
    %655 = vmatpush1.msra.mxu0 0.0
    %656 = vmatprep.subr.mxu0 0.0
    %657 = vmatpush1.msra.mxu0 0.0
    %658 = vmatprep.subr.mxu0 0.0
    %659 = vmatpush1.msra.mxu0 0.0
    %660 = vmatprep.subr.mxu0 0.0
    %661 = vmatpush1.msra.mxu0 0.0
    %662 = vmatprep.subr.mxu0 0.0
    %663 = vmatpush1.msra.mxu0 0.0
    %664 = vmatprep.subr.mxu0 0.0
    %665 = vmatpush1.msra.mxu0 0.0
    %666 = vmatprep.subr.mxu0 0.0
    %667 = vmatpush1.msra.mxu0 0.0
    %668 = vmatprep.subr.mxu0 0.0
    %669 = vmatpush1.msra.mxu0 0.0
    %670 = vmatprep.subr.mxu0 0.0
    %671 = vmatpush1.msra.mxu0 0.0
    %672 = vmatprep.subr.mxu0 0.0
    %673 = vmatpush1.msra.mxu0 0.0
    %674 = vmatprep.subr.mxu0 0.0
    %675 = vmatpush1.msra.mxu0 0.0
    %676 = vmatprep.subr.mxu0 0.0
    %677 = vmatpush1.msra.mxu0 %v645
    %678 = vmatprep.subr.mxu0 0.0
    %679 = vmatpush1.msra.mxu0 %v644
    %680 = vmatprep.subr.mxu0 0.0
    %681 = vmatpush2.msra.mxu0 0.0
    %682 = vmatprep.subr.mxu0 0.0
    %683 = vmatpush2.msra.mxu0 0.0
    %684 = vmatprep.subr.mxu0 0.0
    %685 = vmatpush2.msra.mxu0 0.0
    %686 = vmatprep.subr.mxu0 0.0
    %687 = vmatpush2.msra.mxu0 0.0
    %688 = vmatprep.subr.mxu0 0.0
    %689 = vmatpush2.msra.mxu0 0.0
    %690 = vmatprep.subr.mxu0 0.0
    %691 = vmatpush2.msra.mxu0 0.0
    %692 = vmatprep.subr.mxu0 0.0
    %693 = vmatpush2.msra.mxu0 0.0
    %694 = vmatprep.subr.mxu0 0.0
    %695 = vmatpush2.msra.mxu0 0.0
    %696 = vmatprep.subr.mxu0 0.0
    %697 = vmatpush2.msra.mxu0 0.0
    %698 = vmatprep.subr.mxu0 0.0
    %699 = vmatpush2.msra.mxu0 0.0
    %700 = vmatprep.subr.mxu0 0.0
    %701 = vmatpush2.msra.mxu0 0.0
    %702 = vmatprep.subr.mxu0 0.0
    %703 = vmatpush2.msra.mxu0 0.0
    %704 = vmatprep.subr.mxu0 0.0
    %705 = vmatpush2.msra.mxu0 0.0
    %706 = vmatprep.subr.mxu0 0.0
    %707 = vmatpush2.msra.mxu0 0.0
    %708 = vmatprep.subr.mxu0 0.0
    %709 = vmatpush2.msra.mxu0 0.0
    %710 = vmatprep.subr.mxu0 0.0
    %711 = vmatpush2.msra.mxu0 0.0
    %712 = vmatprep.mubr.f32.mxu0 0.0
    %713 = vmatmul.mubr.f32.gmra.mxu0 %v140
    %v714 = vpop.f32.mrf.mxu0
    %v715 = vadd.f32 0.0, %v714
    %v716 = vpop.f32.mrf.mxu0
    %717 = vmatprep.mubr.f32.mxu0 0.0
    %718 = vmatmul.mubr.f32.gmra.mxu0 %v143
    %v719 = vpop.f32.mrf.mxu0
    %v720 = vadd.f32 0.0, %v719
    %v721 = vpop.f32.mrf.mxu0
    %722 = vdwg.mxu0
    %723 = vmatprep.subr.mxu0 0.0
    %724 = vmatpush1.msra.mxu0 0.0
    %725 = vmatprep.subr.mxu0 0.0
    %726 = vmatpush1.msra.mxu0 0.0
    %727 = vmatprep.subr.mxu0 0.0
    %728 = vmatpush1.msra.mxu0 0.0
    %729 = vmatprep.subr.mxu0 0.0
    %730 = vmatpush1.msra.mxu0 0.0
    %731 = vmatprep.subr.mxu0 0.0
    %732 = vmatpush1.msra.mxu0 0.0
    %733 = vmatprep.subr.mxu0 0.0
    %734 = vmatpush1.msra.mxu0 0.0
    %735 = vmatprep.subr.mxu0 0.0
    %736 = vmatpush1.msra.mxu0 0.0
    %737 = vmatprep.subr.mxu0 0.0
    %738 = vmatpush1.msra.mxu0 0.0
    %739 = vmatprep.subr.mxu0 0.0
    %740 = vmatpush1.msra.mxu0 0.0
    %741 = vmatprep.subr.mxu0 0.0
    %742 = vmatpush1.msra.mxu0 0.0
    %743 = vmatprep.subr.mxu0 0.0
    %744 = vmatpush1.msra.mxu0 0.0
    %745 = vmatprep.subr.mxu0 0.0
    %746 = vmatpush1.msra.mxu0 0.0
    %747 = vmatprep.subr.mxu0 0.0
    %748 = vmatpush1.msra.mxu0 0.0
    %749 = vmatprep.subr.mxu0 0.0
    %750 = vmatpush1.msra.mxu0 0.0
    %751 = vmatprep.subr.mxu0 0.0
    %752 = vmatpush1.msra.mxu0 %v647
    %753 = vmatprep.subr.mxu0 0.0
    %754 = vmatpush1.msra.mxu0 %v646
    %755 = vmatprep.subr.mxu0 0.0
    %756 = vmatpush2.msra.mxu0 0.0
    %757 = vmatprep.subr.mxu0 0.0
    %758 = vmatpush2.msra.mxu0 0.0
    %759 = vmatprep.subr.mxu0 0.0
    %760 = vmatpush2.msra.mxu0 0.0
    %761 = vmatprep.subr.mxu0 0.0
    %762 = vmatpush2.msra.mxu0 0.0
    %763 = vmatprep.subr.mxu0 0.0
    %764 = vmatpush2.msra.mxu0 0.0
    %765 = vmatprep.subr.mxu0 0.0
    %766 = vmatpush2.msra.mxu0 0.0
    %767 = vmatprep.subr.mxu0 0.0
    %768 = vmatpush2.msra.mxu0 0.0
    %769 = vmatprep.subr.mxu0 0.0
    %770 = vmatpush2.msra.mxu0 0.0
    %771 = vmatprep.subr.mxu0 0.0
    %772 = vmatpush2.msra.mxu0 0.0
    %773 = vmatprep.subr.mxu0 0.0
    %774 = vmatpush2.msra.mxu0 0.0
    %775 = vmatprep.subr.mxu0 0.0
    %776 = vmatpush2.msra.mxu0 0.0
    %777 = vmatprep.subr.mxu0 0.0
    %778 = vmatpush2.msra.mxu0 0.0
    %779 = vmatprep.subr.mxu0 0.0
    %780 = vmatpush2.msra.mxu0 0.0
    %781 = vmatprep.subr.mxu0 0.0
    %782 = vmatpush2.msra.mxu0 0.0
    %783 = vmatprep.subr.mxu0 0.0
    %784 = vmatpush2.msra.mxu0 0.0
    %785 = vmatprep.subr.mxu0 0.0
    %786 = vmatpush2.msra.mxu0 0.0
    %787 = vmatprep.mubr.f32.mxu0 0.0
    %788 = vmatmul.mubr.f32.gmra.mxu0 %v224
    %v789 = vpop.f32.mrf.mxu0
    %v790 = vadd.f32 0.0, %v789
    %v791 = vpop.f32.mrf.mxu0
    %792 = vmatprep.mubr.f32.mxu0 0.0
    %793 = vmatmul.mubr.f32.gmra.mxu0 %v227
    %v794 = vpop.f32.mrf.mxu0
    %v795 = vadd.f32 0.0, %v794
    %v796 = vpop.f32.mrf.mxu0
    %797 = vdwg.mxu0
    %v798 = vlaneseq
    %v799 = vshrl.u32 %v798, 7
    %v800 = vsub.s32 2, %v799
    %v801 = vrot.slane %v131, %v800
    %802 = vmatprep.subr.mxu0 0.0
    %803 = vmatpush1.msra.mxu0 %v114
    %804 = vmatprep.subr.mxu0 0.0
    %805 = vmatpush1.msra.mxu0 %v113
    %806 = vmatprep.subr.mxu0 0.0
    %807 = vmatpush1.msra.mxu0 %v112
    %808 = vmatprep.subr.mxu0 0.0
    %809 = vmatpush1.msra.mxu0 %v111
    %810 = vmatprep.subr.mxu0 0.0
    %811 = vmatpush1.msra.mxu0 %v110
    %812 = vmatprep.subr.mxu0 0.0
    %813 = vmatpush1.msra.mxu0 %v109
    %814 = vmatprep.subr.mxu0 0.0
    %815 = vmatpush1.msra.mxu0 %v108
    %816 = vmatprep.subr.mxu0 0.0
    %817 = vmatpush1.msra.mxu0 %v107
    %818 = vmatprep.subr.mxu0 0.0
    %819 = vmatpush1.msra.mxu0 %v106
    %820 = vmatprep.subr.mxu0 0.0
    %821 = vmatpush1.msra.mxu0 %v105
    %822 = vmatprep.subr.mxu0 0.0
    %823 = vmatpush1.msra.mxu0 %v104
    %824 = vmatprep.subr.mxu0 0.0
    %825 = vmatpush1.msra.mxu0 %v103
    %826 = vmatprep.subr.mxu0 0.0
    %827 = vmatpush1.msra.mxu0 %v102
    %828 = vmatprep.subr.mxu0 0.0
    %829 = vmatpush1.msra.mxu0 %v101
    %830 = vmatprep.subr.mxu0 0.0
    %831 = vmatpush1.msra.mxu0 %v100
    %832 = vmatprep.subr.mxu0 0.0
    %833 = vmatpush1.msra.mxu0 %v99
    %834 = vmatprep.subr.mxu0 0.0
    %835 = vmatpush2.msra.mxu0 %v130
    %836 = vmatprep.subr.mxu0 0.0
    %837 = vmatpush2.msra.mxu0 %v129
    %838 = vmatprep.subr.mxu0 0.0
    %839 = vmatpush2.msra.mxu0 %v128
    %840 = vmatprep.subr.mxu0 0.0
    %841 = vmatpush2.msra.mxu0 %v127
    %842 = vmatprep.subr.mxu0 0.0
    %843 = vmatpush2.msra.mxu0 %v126
    %844 = vmatprep.subr.mxu0 0.0
    %845 = vmatpush2.msra.mxu0 %v125
    %846 = vmatprep.subr.mxu0 0.0
    %847 = vmatpush2.msra.mxu0 %v124
    %848 = vmatprep.subr.mxu0 0.0
    %849 = vmatpush2.msra.mxu0 %v123
    %850 = vmatprep.subr.mxu0 0.0
    %851 = vmatpush2.msra.mxu0 %v122
    %852 = vmatprep.subr.mxu0 0.0
    %853 = vmatpush2.msra.mxu0 %v121
    %854 = vmatprep.subr.mxu0 0.0
    %855 = vmatpush2.msra.mxu0 %v120
    %856 = vmatprep.subr.mxu0 0.0
    %857 = vmatpush2.msra.mxu0 %v119
    %858 = vmatprep.subr.mxu0 0.0
    %859 = vmatpush2.msra.mxu0 %v118
    %860 = vmatprep.subr.mxu0 0.0
    %861 = vmatpush2.msra.mxu0 %v117
    %862 = vmatprep.subr.mxu0 0.0
    %863 = vmatpush2.msra.mxu0 %v116
    %864 = vmatprep.subr.mxu0 0.0
    %865 = vmatpush2.msra.mxu0 %v115
    %866 = vmatprep.mubr.f32.mxu0 %v715
    %867 = vmatmul.mubr.f32.gmra.mxu0 %v644
    %v868 = vpop.f32.mrf.mxu0
    %v869 = vadd.f32 %v801, %v868
    %v870 = vpop.f32.mrf.mxu0
    %871 = vmatprep.mubr.f32.mxu0 %v720
    %872 = vmatmul.mubr.f32.gmra.mxu0 %v645
    %v873 = vpop.f32.mrf.mxu0
    %v874 = vadd.f32 %v801, %v873
    %v875 = vpop.f32.mrf.mxu0
    %876 = vmatprep.mubr.f32.mxu0 %v790
    %877 = vmatmul.mubr.f32.gmra.mxu0 %v646
    %v878 = vpop.f32.mrf.mxu0
    %v879 = vadd.f32 %v801, %v878
    %v880 = vpop.f32.mrf.mxu0
    %881 = vmatprep.mubr.f32.mxu0 %v795
    %882 = vmatmul.mubr.f32.gmra.mxu0 %v647
    %v883 = vpop.f32.mrf.mxu0
    %v884 = vadd.f32 %v801, %v883
    %v885 = vpop.f32.mrf.mxu0
    %886 = vdwg.mxu0
    %v887 = vmax.f32 %v869, 0.0
    %v888 = vmax.f32 %v874, 0.0
    %v889 = vmax.f32 %v879, 0.0
    %v890 = vmax.f32 %v884, 0.0
    %v891 = vmul.f32 %v887, %v31
    %v892 = vmul.f32 %v888, %v32
    %v893 = vmul.f32 %v889, %v33
    %v894 = vmul.f32 %v890, %v34
    %v895 = vmax.f32 %v891, %v892
    %v896 = vrot.slane %v895, 4
    %v897 = vmax.f32 %v895, %v896
    %v898 = vrot.slane %v897, 2
    %v899 = vmax.f32 %v897, %v898
    %v900 = vrot.slane %v899, 1
    %v901 = vmax.f32 %v899, %v900
    %v902 = vmax.f32 %v893, %v894
    %v903 = vrot.slane %v902, 4
    %v904 = vmax.f32 %v902, %v903
    %v905 = vrot.slane %v904, 2
    %v906 = vmax.f32 %v904, %v905
    %v907 = vrot.slane %v906, 1
    %v908 = vmax.f32 %v906, %v907
    %vm909 = vcmask 1040384
    %v910 = vsel %vm909, %v901, %v908
    %v911 = vlaneseq
    %v912 = vshrl.u32 %v911, 7
    %v913 = vsub.s32 3, %v912
    %v914 = vrot.slane %v131, %v913
    %v915 = vmul.f32 %v910, %v914
    %vm916 = vcmask 1041408
    %v917 = vsel %vm916, %v915, 0.0
    %918 = vadd.xlane.f32.xlu0 %v917
    %v919 = vpop.xlane.xlu0 %918
    %v920 = vlaneseq
    %v921 = vshrl.u32 %v920, 7
    %v922 = vsub.s32 4, %v921
    %v923 = vrot.slane %v131, %v922
    %v924 = vadd.f32 %v919, %v923
    %vm925 = vcmask 1024
    %926 = vst.msk [vmem:[%s4] sm:$0x3] %vm925, %v924
    // Predicated region
    $region22: #{toy_graphsage_forward.1} parent=1 // pred_check
      _
    $region23: #{toy_graphsage_forward.1} parent=1 // pred_check_branch
      %928 = sbr.rel (0) target = $region25
    $region24: #{toy_graphsage_forward.1} parent=1 // pred_region
      _
    $region25: #{toy_graphsage_forward.1} parent=1 // pred_fallthru
      _
    // Predicated region
    $region26: #{toy_graphsage_forward.1} parent=1 // pred_check
      _
    $region27: #{toy_graphsage_forward.1} parent=1 // pred_check_branch
      %930 = sbr.rel (0) target = $region29
    $region28: #{toy_graphsage_forward.1} parent=1 // pred_region
      _
    $region29: #{toy_graphsage_forward.1} parent=1 // pred_fallthru
      _
    %931 = vsyncpa [#allocation3], 1

</llo_original>
